<compile_context>
chip_gen: v7x
topology: tpu7x:2x2x1
jax: 0.10.0
libtpu: 0.0.40
codegen_flags: <defaults>
</compile_context>

<pallas_src>
import functools

import numpy as np
import jax
import jax.numpy as jnp
from jax.experimental import pallas as pl
from jax.experimental.pallas import tpu as pltpu


def _mcc_kernel(z_ref, wf_ref, wi_ref, out_ref,
                x_sc, max_sc, scale_sc, cpr_sc,
                *, B, B_pad, N, K, K_pad):
    # z_ref   : (2*B_pad, T_pad) f32   rows [0,B_pad)=y, [B_pad,2*B_pad)=y_hat
    # wf_ref  : (T_pad, 2*K_pad) bf16  forward band basis  [cos | -sin]
    # wi_ref  : (2*K_pad, TILE_LAG) bf16 inverse band basis tile [cos ; -sin]
    # out_ref : (1, 1) f32 scalar loss (SMEM)
    # x_sc    : (B_pad, 2*K_pad) bf16  cross spectrum [Re | Im] (persists)
    # max_sc  : (B_pad, 1) f32 running max over lags
    # scale_sc: (B_pad, 1) f32 (N-1)/(N * sigma_y * sigma_yhat) * row_mask
    # cpr_sc  : (1,) f32 SMEM   c_pr = K / (power_y * power_yhat)
    l = pl.program_id(0)

    @pl.when(l == 0)
    def _forward_stage():
        inv_n = 1.0 / N
        z = z_ref[...]                                       # (2*B_pad, T_pad) f32

        # Time-domain statistics (exact f32). Parseval recovers the full-
        # spectrum power and the ddof=1 std over the padded length N without
        # ever materializing the zero pad or the mean removal (band excludes
        # k = 0, so centering does not change the masked spectrum).
        s1 = jnp.sum(z, axis=-1, keepdims=True)              # (2*B_pad, 1)
        s2 = jnp.sum(z * z, axis=-1, keepdims=True)
        css = jnp.maximum(s2 - s1 * s1 * inv_n, 0.0)         # sum (x - mean_N)^2 >= 0

        row = jax.lax.broadcasted_iota(jnp.int32, (B_pad, 1), 0)
        valid = (row < B).astype(jnp.float32)                # mask padded batch rows

        css_y = css[:B_pad, :]
        css_yh = css[B_pad:, :]
        rs_y = jax.lax.rsqrt(jnp.maximum(css_y, 1e-30))
        rs_yh = jax.lax.rsqrt(jnp.maximum(css_yh, 1e-30))
        # 1/(sigma_y*sigma_yhat) * 1/N, with ddof=1 folded in, padded rows -> 0.
        scale_sc[...] = rs_y * rs_yh * ((N - 1) * inv_n) * valid

        power_y = N * jnp.sum(css_y * valid)                 # sum_k |F_y|^2 (all batch)
        power_yh = N * jnp.sum(css_yh * valid)
        cpr_sc[0] = (K / power_y) * (1.0 / power_yh)         # split div: no f32 overflow

        # Band-limited forward DFT of [y ; y_hat] in one bf16 MXU matmul.
        F = jnp.dot(z.astype(jnp.bfloat16), wf_ref[...],
                    preferred_element_type=jnp.float32)      # (2*B_pad, 2*K_pad)
        Ry, Iy = F[:B_pad, :K_pad], F[:B_pad, K_pad:]
        Ryh, Iyh = F[B_pad:, :K_pad], F[B_pad:, K_pad:]

        # Cross spectrum F_y * conj(F_yhat), band only (no mask multiply).
        x_sc[:, :K_pad] = (Ry * Ryh + Iy * Iyh).astype(jnp.bfloat16)   # Re(X)
        x_sc[:, K_pad:] = (Iy * Ryh - Ry * Iyh).astype(jnp.bfloat16)   # Im(X)

        max_sc[...] = jnp.full_like(max_sc, -jnp.inf)

    # Lag-tiled inverse stage: real(ifft(X)) restricted to this lag tile,
    # one bf16 MXU matmul per grid step (wi tile double-buffered by Pallas).
    cc = jnp.dot(x_sc[...], wi_ref[...],
                 preferred_element_type=jnp.float32)         # (B_pad, TILE_LAG)
    max_sc[...] = jnp.maximum(max_sc[...], jnp.max(cc, axis=-1, keepdims=True))

    @pl.when(l == pl.num_programs(0) - 1)
    def _finalize():
        mcc = max_sc[...] * scale_sc[...]                    # padded rows exactly 0
        out_ref[0, 0] = -cpr_sc[0] * (jnp.sum(mcc) * (1.0 / B))


def _round_up(x, m):
    return ((x + m - 1) // m) * m


@functools.lru_cache(maxsize=None)
def _mcc_plan(B, T, low, high, sampling_rate):
    """Build bases + compiled call once per (B, T, band, fs)."""
    N = 2 * T                                    # semantic FFT length (zero pad to 2T)
    # Dropping the mean removal / zero pad relies on the band excluding DC.
    assert low > 0.0, "band-limited formulation requires a strictly positive low cut"

    freqs = np.fft.fftfreq(N, d=1.0 / sampling_rate)
    band = np.where((freqs >= low) & (freqs <= high))[0]     # positive bins only
    K = int(band.size)
    assert K >= 1, "bandpass selects no frequency bins"

    B_pad = _round_up(B, 8)                      # sublane-aligned y / y_hat split
    T_pad = _round_up(T, 128)                    # forward contraction lanes
    K_pad = _round_up(K, 128)                    # band lanes (2*K_pad is 256-multiple)
    tile_lag = 1024 if N >= 1024 else _round_up(N, 256)      # inverse output tile
    N_tot = _round_up(N, tile_lag)               # cols >= N are the periodic extension
    num_lag = N_tot // tile_lag

    # Forward band basis: rows = time 0..T-1 (rest zero), cols = [cos | -sin].
    n_t = np.arange(T)[:, None]
    th_f = 2.0 * np.pi * n_t * band[None, :] / N             # (T, K)
    wf = np.zeros((T_pad, 2 * K_pad), np.float32)
    wf[:T, :K] = np.cos(th_f)
    wf[:T, K_pad:K_pad + K] = -np.sin(th_f)

    # Inverse band basis: rows = [cos ; -sin] over band bins, cols = lags.
    n_o = np.arange(N_tot)[None, :]
    th_i = 2.0 * np.pi * band[:, None] * n_o / N             # (K, N_tot)
    wi = np.zeros((2 * K_pad, N_tot), np.float32)
    wi[:K, :] = np.cos(th_i)
    wi[K_pad:K_pad + K, :] = -np.sin(th_i)

    wf_dev = jnp.asarray(wf, dtype=jnp.bfloat16)
    wi_dev = jnp.asarray(wi, dtype=jnp.bfloat16)

    call = pl.pallas_call(
        functools.partial(_mcc_kernel, B=B, B_pad=B_pad, N=N, K=K, K_pad=K_pad),
        out_shape=jax.ShapeDtypeStruct((1, 1), jnp.float32),
        grid=(num_lag,),
        in_specs=[
            pl.BlockSpec((2 * B_pad, T_pad), lambda l: (0, 0)),       # z (resident)
            pl.BlockSpec((T_pad, 2 * K_pad), lambda l: (0, 0)),       # wf (resident)
            pl.BlockSpec((2 * K_pad, tile_lag), lambda l: (0, l)),    # wi (streamed)
        ],
        out_specs=pl.BlockSpec(memory_space=pltpu.MemorySpace.SMEM),
        scratch_shapes=[
            pltpu.VMEM((B_pad, 2 * K_pad), jnp.bfloat16),   # cross spectrum
            pltpu.VMEM((B_pad, 1), jnp.float32),            # running max
            pltpu.VMEM((B_pad, 1), jnp.float32),            # inv sigma product scale
            pltpu.SMEM((1,), jnp.float32),                  # c_pr
        ],
        compiler_params=pltpu.CompilerParams(
            dimension_semantics=("arbitrary",),
            vmem_limit_bytes=48 * 1024 * 1024,              # headroom on v7x 64 MiB
        ),
    )

    @jax.jit
    def run(y, y_hat, wf_d, wi_d):
        z = jnp.zeros((2 * B_pad, T_pad), jnp.float32)
        z = z.at[:B, :T].set(y.astype(jnp.float32))
        z = z.at[B_pad:B_pad + B, :T].set(y_hat.astype(jnp.float32))
        return call(z, wf_d, wi_d)[0, 0]

    def loss_fn(y, y_hat):
        return run(y, y_hat, wf_dev, wi_dev)

    return loss_fn


def mcc_loss(y, y_hat, bandpass_freq=(40.0 / 60.0, 250.0 / 60.0), sampling_rate=30):
    B, T = y.shape
    low, high = bandpass_freq
    fn = _mcc_plan(int(B), int(T), float(low), float(high), float(sampling_rate))
    return fn(y, y_hat)


def mcc_loss_ref(y, y_hat, bandpass_freq=(40.0 / 60.0, 250.0 / 60.0), sampling_rate=30):
    """Pure-JAX reference mirroring the PyTorch forward (uses jnp.fft)."""
    T = y.shape[-1]
    y = jnp.pad(y, ((0, 0), (0, T)))
    yh = jnp.pad(y_hat, ((0, 0), (0, T)))
    y = y - y.mean(-1, keepdims=True)
    yh = yh - yh.mean(-1, keepdims=True)
    Fy = jnp.fft.fft(y)
    Fyh = jnp.fft.fft(yh)
    freqs = np.fft.fftfreq(Fy.shape[-1], d=1.0 / sampling_rate)
    low, high = bandpass_freq
    mask = jnp.asarray((freqs >= low) & (freqs <= high))
    cross = Fy * jnp.conj(Fyh) * mask
    cc = jnp.fft.ifft(cross).real
    sy = jnp.std(y, axis=-1, ddof=1, keepdims=True)
    syh = jnp.std(yh, axis=-1, ddof=1, keepdims=True)
    ncc = cc / (sy * syh)
    mcc = jnp.max(ncc, axis=-1)
    py = jnp.sum(jnp.abs(Fy) ** 2)
    pyh = jnp.sum(jnp.abs(Fyh) ** 2)
    c_pr = jnp.sum(mask) / (py * pyh)
    return -c_pr * mcc.mean()


if __name__ == "__main__":
    key = jax.random.PRNGKey(0)
    k1, k2 = jax.random.split(key)
    B, T = 2, 128                     # 30 Hz rPPG chunk of ~4.3 s, batch of 2
    y = jax.random.normal(k1, (B, T), dtype=jnp.float32)
    y_hat = jax.random.normal(k2, (B, T), dtype=jnp.float32)

    loss = mcc_loss(y, y_hat)
    jax.block_until_ready(loss)

    ref = mcc_loss_ref(y, y_hat)
    # bf16 DFT bases / cross spectrum (f32 accumulation) introduce ~0.2-0.5%
    # numeric delta vs the f32 jnp.fft reference; structural errors would be
    # orders of magnitude larger.
    assert np.allclose(np.asarray(loss), np.asarray(ref), rtol=2e-2, atol=1e-8), (loss, ref)

    print("KERNEL_OK")
</pallas_src>

<mosaic_0001>
module attributes {stable_mosaic.version = 11 : i64} {
  func.func @_mcc_kernel(%arg0: i32, %arg1: memref<16x128xf32, #tpu.memory_space<vmem>>, %arg2: memref<128x256xbf16, #tpu.memory_space<vmem>>, %arg3: memref<256x256xbf16, #tpu.memory_space<vmem>>, %arg4: memref<1x1xf32, #tpu.memory_space<smem>>, %arg5: memref<8x256xbf16, #tpu.memory_space<vmem>>, %arg6: memref<8x1xf32, #tpu.memory_space<vmem>>, %arg7: memref<8x1xf32, #tpu.memory_space<vmem>>, %arg8: memref<1xf32, #tpu.memory_space<smem>>) attributes {dimension_semantics = [#tpu.dimension_semantics<arbitrary>], iteration_bounds = array<i64: 1>, scalar_prefetch = 0 : i64, scratch_operands = 4 : i64, tpu.core_type = #tpu.core_type<tc>, window_params = [{pipeline_mode = #tpu.pipeline_mode<synchronous>, transform_indices = @transform_0, window_bounds = array<i64: 16, 128>}, {pipeline_mode = #tpu.pipeline_mode<synchronous>, transform_indices = @transform_1, window_bounds = array<i64: 128, 256>}, {transform_indices = @transform_2, window_bounds = array<i64: 256, 256>}, {transform_indices = @transform_3, window_bounds = array<i64: 1, 1>}]} {
    %c0_i32 = arith.constant 0 : i32
    %0 = arith.cmpi eq, %arg0, %c0_i32 : i32
    %1 = arith.extui %0 : i1 to i32
    %c0_i32_0 = arith.constant 0 : i32
    %2 = arith.cmpi ne, %1, %c0_i32_0 : i32
    scf.if %2 {
      %c0_11 = arith.constant 0 : index
      %c0_12 = arith.constant 0 : index
      %14 = vector.load %arg1[%c0_11, %c0_12] : memref<16x128xf32, #tpu.memory_space<vmem>>, vector<16x128xf32>
      %cst_13 = arith.constant dense<0.000000e+00> : vector<16xf32>
      %15 = vector.multi_reduction <add>, %14, %cst_13 [1] : vector<16x128xf32> to vector<16xf32>
      %16 = vector.shape_cast %15 : vector<16xf32> to vector<16x1xf32>
      %17 = arith.mulf %14, %14 : vector<16x128xf32>
      %cst_14 = arith.constant dense<0.000000e+00> : vector<16xf32>
      %18 = vector.multi_reduction <add>, %17, %cst_14 [1] : vector<16x128xf32> to vector<16xf32>
      %19 = vector.shape_cast %18 : vector<16xf32> to vector<16x1xf32>
      %20 = arith.mulf %16, %16 : vector<16x1xf32>
      %cst_15 = arith.constant 3.906250e-03 : f32
      %21 = vector.broadcast %cst_15 : f32 to vector<16x1xf32>
      %22 = arith.mulf %20, %21 : vector<16x1xf32>
      %23 = arith.subf %19, %22 : vector<16x1xf32>
      %cst_16 = arith.constant 0.000000e+00 : f32
      %24 = vector.broadcast %cst_16 : f32 to vector<16x1xf32>
      %25 = arith.maximumf %23, %24 : vector<16x1xf32>
      %26 = tpu.iota {dimensions = array<i32: 0>} : vector<8x1xi32>
      %c2_i32 = arith.constant 2 : i32
      %27 = vector.broadcast %c2_i32 : i32 to vector<8x1xi32>
      %28 = arith.cmpi slt, %26, %27 : vector<8x1xi32>
      %29 = arith.extui %28 : vector<8x1xi1> to vector<8x1xi32>
      %30 = arith.sitofp %29 : vector<8x1xi32> to vector<8x1xf32>
      %31 = vector.extract_strided_slice %25 {offsets = [0, 0], sizes = [8, 1], strides = [1, 1]} : vector<16x1xf32> to vector<8x1xf32>
      %32 = vector.extract_strided_slice %25 {offsets = [8, 0], sizes = [8, 1], strides = [1, 1]} : vector<16x1xf32> to vector<8x1xf32>
      %cst_17 = arith.constant 1.000000e-30 : f32
      %33 = vector.broadcast %cst_17 : f32 to vector<8x1xf32>
      %34 = arith.maximumf %31, %33 : vector<8x1xf32>
      %35 = math.rsqrt %34 : vector<8x1xf32>
      %cst_18 = arith.constant 1.000000e-30 : f32
      %36 = vector.broadcast %cst_18 : f32 to vector<8x1xf32>
      %37 = arith.maximumf %32, %36 : vector<8x1xf32>
      %38 = math.rsqrt %37 : vector<8x1xf32>
      %39 = arith.mulf %35, %38 : vector<8x1xf32>
      %cst_19 = arith.constant 0.99609375 : f32
      %40 = vector.broadcast %cst_19 : f32 to vector<8x1xf32>
      %41 = arith.mulf %39, %40 : vector<8x1xf32>
      %42 = arith.mulf %41, %30 : vector<8x1xf32>
      %c0_20 = arith.constant 0 : index
      %c0_21 = arith.constant 0 : index
      %43 = vector.load %arg7[%c0_20, %c0_21] : memref<8x1xf32, #tpu.memory_space<vmem>>, vector<8x1xf32>
      tpu.vector_store %arg7[%c0_20, %c0_21], %42 {strides = array<i32>} : memref<8x1xf32, #tpu.memory_space<vmem>>, vector<8x1xf32>,
      %44 = arith.mulf %31, %30 : vector<8x1xf32>
      %45 = vector.shape_cast %44 : vector<8x1xf32> to vector<1x8x1xf32>
      %cst_22 = arith.constant dense<0.000000e+00> : vector<1xf32>
      %46 = vector.multi_reduction <add>, %45, %cst_22 [1, 2] : vector<1x8x1xf32> to vector<1xf32>
      %47 = vector.shape_cast %46 : vector<1xf32> to vector<1x1x1xf32>
      %48 = vector.extract %47[0, 0, 0] : f32 from vector<1x1x1xf32>
      %cst_23 = arith.constant 2.560000e+02 : f32
      %49 = arith.mulf %cst_23, %48 : f32
      %50 = arith.mulf %32, %30 : vector<8x1xf32>
      %51 = vector.shape_cast %50 : vector<8x1xf32> to vector<1x8x1xf32>
      %cst_24 = arith.constant dense<0.000000e+00> : vector<1xf32>
      %52 = vector.multi_reduction <add>, %51, %cst_24 [1, 2] : vector<1x8x1xf32> to vector<1xf32>
      %53 = vector.shape_cast %52 : vector<1xf32> to vector<1x1x1xf32>
      %54 = vector.extract %53[0, 0, 0] : f32 from vector<1x1x1xf32>
      %cst_25 = arith.constant 2.560000e+02 : f32
      %55 = arith.mulf %cst_25, %54 : f32
      %cst_26 = arith.constant 3.000000e+01 : f32
      %56 = arith.divf %cst_26, %49 : f32
      %cst_27 = arith.constant 1.000000e+00 : f32
      %57 = arith.divf %cst_27, %55 : f32
      %58 = arith.mulf %56, %57 : f32
      %c0_28 = arith.constant 0 : index
      %59 = memref.load %arg8[%c0_28] : memref<1xf32, #tpu.memory_space<smem>>
      memref.store %58, %arg8[%c0_28] : memref<1xf32, #tpu.memory_space<smem>>
      %60 = arith.truncf %14 : vector<16x128xf32> to vector<16x128xbf16>
      %c0_29 = arith.constant 0 : index
      %c0_30 = arith.constant 0 : index
      %61 = vector.load %arg2[%c0_29, %c0_30] : memref<128x256xbf16, #tpu.memory_space<vmem>>, vector<128x256xbf16>
      %cst_31 = arith.constant dense<0.000000e+00> : vector<16x256xf32>
      %62 = tpu.matmul %60, %61, %cst_31 {dimension_numbers = #tpu.dot_dimension_numbers<[1], [0], [0], [1], [0, 0, 1, 1], [], []>} : vector<16x128xbf16>, vector<128x256xbf16>, vector<16x256xf32> -> vector<16x256xf32>
      %63 = vector.extract_strided_slice %62 {offsets = [0, 0], sizes = [8, 128], strides = [1, 1]} : vector<16x256xf32> to vector<8x128xf32>
      %64 = vector.extract_strided_slice %62 {offsets = [0, 128], sizes = [8, 128], strides = [1, 1]} : vector<16x256xf32> to vector<8x128xf32>
      %65 = vector.extract_strided_slice %62 {offsets = [8, 0], sizes = [8, 128], strides = [1, 1]} : vector<16x256xf32> to vector<8x128xf32>
      %66 = vector.extract_strided_slice %62 {offsets = [8, 128], sizes = [8, 128], strides = [1, 1]} : vector<16x256xf32> to vector<8x128xf32>
      %67 = arith.mulf %63, %65 : vector<8x128xf32>
      %68 = arith.mulf %64, %66 : vector<8x128xf32>
      %69 = arith.addf %67, %68 : vector<8x128xf32>
      %70 = arith.truncf %69 : vector<8x128xf32> to vector<8x128xbf16>
      %c0_32 = arith.constant 0 : index
      %c0_33 = arith.constant 0 : index
      %71 = vector.load %arg5[%c0_32, %c0_33] : memref<8x256xbf16, #tpu.memory_space<vmem>>, vector<8x128xbf16>
      tpu.vector_store %arg5[%c0_32, %c0_33], %70 {strides = array<i32>} : memref<8x256xbf16, #tpu.memory_space<vmem>>, vector<8x128xbf16>,
      %72 = arith.mulf %64, %65 : vector<8x128xf32>
      %73 = arith.mulf %63, %66 : vector<8x128xf32>
      %74 = arith.subf %72, %73 : vector<8x128xf32>
      %75 = arith.truncf %74 : vector<8x128xf32> to vector<8x128xbf16>
      %c0_34 = arith.constant 0 : index
      %c128 = arith.constant 128 : index
      %76 = vector.load %arg5[%c0_34, %c128] : memref<8x256xbf16, #tpu.memory_space<vmem>>, vector<8x128xbf16>
      tpu.vector_store %arg5[%c0_34, %c128], %75 {strides = array<i32>} : memref<8x256xbf16, #tpu.memory_space<vmem>>, vector<8x128xbf16>,
      %cst_35 = arith.constant 0xFF800000 : f32
      %77 = vector.broadcast %cst_35 : f32 to vector<8x1xf32>
      %c0_36 = arith.constant 0 : index
      %c0_37 = arith.constant 0 : index
      %78 = vector.load %arg6[%c0_36, %c0_37] : memref<8x1xf32, #tpu.memory_space<vmem>>, vector<8x1xf32>
      tpu.vector_store %arg6[%c0_36, %c0_37], %77 {strides = array<i32>} : memref<8x1xf32, #tpu.memory_space<vmem>>, vector<8x1xf32>,
    } else {
    }
    %c0 = arith.constant 0 : index
    %c0_1 = arith.constant 0 : index
    %3 = vector.load %arg5[%c0, %c0_1] : memref<8x256xbf16, #tpu.memory_space<vmem>>, vector<8x256xbf16>
    %c0_2 = arith.constant 0 : index
    %c0_3 = arith.constant 0 : index
    %4 = vector.load %arg3[%c0_2, %c0_3] : memref<256x256xbf16, #tpu.memory_space<vmem>>, vector<256x256xbf16>
    %cst = arith.constant dense<0.000000e+00> : vector<8x256xf32>
    %5 = tpu.matmul %3, %4, %cst {dimension_numbers = #tpu.dot_dimension_numbers<[1], [0], [0], [1], [0, 0, 1, 1], [], []>} : vector<8x256xbf16>, vector<256x256xbf16>, vector<8x256xf32> -> vector<8x256xf32>
    %c0_4 = arith.constant 0 : index
    %c0_5 = arith.constant 0 : index
    %6 = vector.load %arg6[%c0_4, %c0_5] : memref<8x1xf32, #tpu.memory_space<vmem>>, vector<8x1xf32>
    %cst_6 = arith.constant dense<0xFF800000> : vector<8xf32>
    %7 = vector.multi_reduction <maximumf>, %5, %cst_6 [1] : vector<8x256xf32> to vector<8xf32>
    %8 = vector.shape_cast %7 : vector<8xf32> to vector<8x1xf32>
    %9 = arith.maximumf %6, %8 : vector<8x1xf32>
    %c0_7 = arith.constant 0 : index
    %c0_8 = arith.constant 0 : index
    %10 = vector.load %arg6[%c0_7, %c0_8] : memref<8x1xf32, #tpu.memory_space<vmem>>, vector<8x1xf32>
    tpu.vector_store %arg6[%c0_7, %c0_8], %9 {strides = array<i32>} : memref<8x1xf32, #tpu.memory_space<vmem>>, vector<8x1xf32>,
    %c0_i32_9 = arith.constant 0 : i32
    %11 = arith.cmpi eq, %arg0, %c0_i32_9 : i32
    %12 = arith.extui %11 : i1 to i32
    %c0_i32_10 = arith.constant 0 : i32
    %13 = arith.cmpi ne, %12, %c0_i32_10 : i32
    scf.if %13 {
      %c0_11 = arith.constant 0 : index
      %c0_12 = arith.constant 0 : index
      %14 = vector.load %arg6[%c0_11, %c0_12] : memref<8x1xf32, #tpu.memory_space<vmem>>, vector<8x1xf32>
      %c0_13 = arith.constant 0 : index
      %c0_14 = arith.constant 0 : index
      %15 = vector.load %arg7[%c0_13, %c0_14] : memref<8x1xf32, #tpu.memory_space<vmem>>, vector<8x1xf32>
      %16 = arith.mulf %14, %15 : vector<8x1xf32>
      %c0_15 = arith.constant 0 : index
      %17 = memref.load %arg8[%c0_15] : memref<1xf32, #tpu.memory_space<smem>>
      %cst_16 = arith.constant 0.000000e+00 : f32
      %18 = arith.subf %cst_16, %17 : f32
      %19 = vector.shape_cast %16 : vector<8x1xf32> to vector<1x8x1xf32>
      %cst_17 = arith.constant dense<0.000000e+00> : vector<1xf32>
      %20 = vector.multi_reduction <add>, %19, %cst_17 [1, 2] : vector<1x8x1xf32> to vector<1xf32>
      %21 = vector.shape_cast %20 : vector<1xf32> to vector<1x1x1xf32>
      %22 = vector.extract %21[0, 0, 0] : f32 from vector<1x1x1xf32>
      %cst_18 = arith.constant 5.000000e-01 : f32
      %23 = arith.mulf %22, %cst_18 : f32
      %24 = arith.mulf %18, %23 : f32
      %c0_19 = arith.constant 0 : index
      %c0_20 = arith.constant 0 : index
      %25 = memref.load %arg4[%c0_19, %c0_20] : memref<1x1xf32, #tpu.memory_space<smem>>
      memref.store %24, %arg4[%c0_19, %c0_20] : memref<1x1xf32, #tpu.memory_space<smem>>
    } else {
    }
    return
  }
  func.func @transform_0(%arg0: i32) -> (i32, i32) {
    %c0_i32 = arith.constant 0 : i32
    %c0_i32_0 = arith.constant 0 : i32
    %c0_i32_1 = arith.constant 0 : i32
    return %c0_i32, %c0_i32_0 : i32, i32
  }
  func.func @transform_1(%arg0: i32) -> (i32, i32) {
    %c0_i32 = arith.constant 0 : i32
    %c0_i32_0 = arith.constant 0 : i32
    %c0_i32_1 = arith.constant 0 : i32
    return %c0_i32, %c0_i32_0 : i32, i32
  }
  func.func @transform_2(%arg0: i32) -> (i32, i32) {
    %c0_i32 = arith.constant 0 : i32
    %c0_i32_0 = arith.constant 0 : i32
    return %c0_i32, %arg0 : i32, i32
  }
  func.func @transform_3(%arg0: i32) -> (i32, i32) {
    %c0_i32 = arith.constant 0 : i32
    %c0_i32_0 = arith.constant 0 : i32
    %c0_i32_1 = arith.constant 0 : i32
    return %c0_i32, %c0_i32_0 : i32, i32
  }
}

</mosaic_0001>

<llo_original>
// kernel: run.1
$region0: #{run.1}
  #allocation0 [shape = 'u32[]', space=smem, size = 0x4, offset = 0x4, fixed_abs, tag = 'smem constant byte address 0x4 - core index']
  #allocation1 [shape = 'u32[144,128]{1,0:T(1,128)}', space=vmem, size = 0x12000, scoped, tag = 'internal scratch']
  #allocation2 [shape = 'bf16[8,256]{1,0:T(8,128)(2,1)}', space=vmem, size = 0x1000, scoped, tag = 'scratch operand']
  #allocation3 [shape = 'f32[8,1]{1,0:T(8,128)}', space=vmem, size = 0x1000, scoped, tag = 'scratch operand']
  #allocation4 [shape = 'f32[8,1]{1,0:T(8,128)}', space=vmem, size = 0x1000, scoped, tag = 'scratch operand']
  #allocation5 [shape = 'f32[1]{0:T(128)}', space=smem, size = 0x200, scoped, tag = 'scratch operand']
  %s0 = inlined_call_operand.vmem [shape: f32[16,128], index: 0, kind: input, shape index: {}]
  %s1 = inlined_call_operand.hbm [shape: bf16[128,256], index: 1, kind: input, shape index: {}]
  %s2 = inlined_call_operand.hbm [shape: bf16[256,256], index: 2, kind: input, shape index: {}]
  %s3 = inlined_call_operand.hbm [shape: f32[1,1], index: 3, kind: output, shape index: {}]
  %s4 = sld [smem:[#allocation0]]
  $region38: #{run.1} parent=0
    _
  %s6 = ssub.s32 1, %s4
  %s7 = scalar_select 0, %s6, %s4
  $region1: #{run.1} parent=0
    #allocation6 [shape = 'u8[65536]{0}', space=vmem, size = 0x10000, scoped, tag = 'input window, operand 1, single buffered']
    #allocation7 [shape = 's32[1]{0}', space=sflag, size = 0x4, scoped, tag = 'scoped memory for run.1']
    #allocation8 [shape = 's32[1]{0}', space=sflag, size = 0x4, scoped, tag = 'scoped memory for run.1']
    #allocation9 [shape = 'u8[131072]{0}', space=vmem, size = 0x20000, scoped, tag = 'input window, operand 2, single buffered']
    #allocation10 [shape = 's32[1]{0}', space=sflag, size = 0x4, scoped, tag = 'scoped memory for run.1']
    #allocation11 [shape = 'u8[512]{0}', space=smem, size = 0x200, scoped, tag = 'output window, operand 0, single buffered']
    %8 = vsyncpa [#allocation7], 0
    %9 = vsyncpa [#allocation10], 0
    %10 = vsyncpa [#allocation8], 0
    // Predicated region
    $region2: #{run.1} parent=1 // pred_check
      _
    $region3: #{run.1} parent=1 // pred_check_branch
      %12 = sbr.rel (0) target = $region5
    $region4: #{run.1} parent=1 // pred_region
      _
    $region5: #{run.1} parent=1 // pred_fallthru
      _
    // Predicated region
    $region6: #{run.1} parent=1 // pred_check
      _
    $region7: #{run.1} parent=1 // pred_check_branch
      %14 = sbr.rel (0) target = $region9
    $region8: #{run.1} parent=1 // pred_region
      %s16 = ssub.s32 2048, 2048
      %17 = vsyncadd [#allocation7], %s16
      %s18 = sshll.u32 [#allocation6], 4
      %s19 = int_to_ptr.vmem [resolvable:$true] %s18
      %24 = dma.hbm_to_vmem [thread:$0]  %s1, 2048, %s19, [#allocation7], 128, 128, 8
    $region9: #{run.1} parent=1 // pred_fallthru
      _
    // Predicated region
    $region10: #{run.1} parent=1 // pred_check
      _
    $region11: #{run.1} parent=1 // pred_check_branch
      %26 = sbr.rel (0) target = $region13
    $region12: #{run.1} parent=1 // pred_region
      %s28 = ssub.s32 4096, 4096
      %29 = vsyncadd [#allocation10], %s28
      %s30 = sshll.u32 [#allocation9], 4
      %s31 = int_to_ptr.vmem [resolvable:$true] %s30
      %36 = dma.hbm_to_vmem [thread:$0]  %s2, 4096, %s31, [#allocation10], 128, 128, 8
    $region13: #{run.1} parent=1 // pred_fallthru
      _
    // Predicated region
    $region14: #{run.1} parent=1 // pred_check
      _
    $region15: #{run.1} parent=1 // pred_check_branch
      %38 = sbr.rel (0) target = $region17
    $region16: #{run.1} parent=1 // pred_region
      %39 = dma.done [#allocation7], 2048
    $region17: #{run.1} parent=1 // pred_fallthru
      _
    // Predicated region
    $region18: #{run.1} parent=1 // pred_check
      _
    $region19: #{run.1} parent=1 // pred_check_branch
      %41 = sbr.rel (0) target = $region21
    $region20: #{run.1} parent=1 // pred_region
      %42 = dma.done [#allocation10], 4096
    $region21: #{run.1} parent=1 // pred_fallthru
      _
    %p44 = scmp.eq.s32.totalorder 0, 0
    // Predicated region
    $region22: #{run.1} parent=1 // pred_check
      %p45 = pneg %p44
    $region23: #{run.1} parent=1 // pred_check_branch
      %47 = sbr.rel (%p45) target = $region25
    $region24: #{run.1} parent=1 // pred_region
      %v48 = vld [vmem:[%s0] sm:$0xff]
      %v49 = vld [vmem:[%s0 + $0x8] sm:$0xff]
      %50 = vadd.xlane.f32.xlu0 %v48
      %v51 = vpop.xlane.xlu0 %50
      %52 = vadd.xlane.f32.xlu0 %v49
      %v53 = vpop.xlane.xlu0 %52
      %v54 = vmul.f32 %v48, %v48
      %v55 = vmul.f32 %v49, %v49
      %56 = vadd.xlane.f32.xlu0 %v54
      %v57 = vpop.xlane.xlu0 %56
      %58 = vadd.xlane.f32.xlu0 %v55
      %v59 = vpop.xlane.xlu0 %58
      %v60 = vmul.f32 %v51, %v51
      %v61 = vmul.f32 %v53, %v53
      %v62 = vmul.f32 %v60, 0.00390625
      %v63 = vmul.f32 %v61, 0.00390625
      %v64 = vsub.f32 %v57, %v62
      %v65 = vsub.f32 %v59, %v63
      %v66 = vmax.f32 %v64, 0.0
      %v67 = vmax.f32 %v65, 0.0
      %v68 = vlaneseq
      %v69 = vshrl.u32 %v68, 7
      %vm70 = vcmp.lt.s32.totalorder %v69, 2
      %v71 = vsel %vm70, 1, 0
      %v72 = vcvt.s32.f32 %v71
      %v73 = vmax.f32 %v66, 1e-30
      %v74 = vrsqrt.pop %v73
      %v75 = vmax.f32 %v67, 1e-30
      %v76 = vrsqrt.pop %v75
      %v77 = vmul.f32 %v74, %v76
      %v78 = vmul.f32 %v77, 0.99609375
      %v79 = vmul.f32 %v78, %v72
      %vm80 = vcmask 7168
      %81 = vst.msk [vmem:[#allocation4] sm:$0xff] %vm80, %v79
      %v82 = vmul.f32 %v66, %v72
      %v83 = vsel %vm80, %v82, 0.0
      %84 = vadd.xlane.f32.xlu0 %v83
      %v85 = vpop.xlane.xlu0 %84
      %v86 = vrot.slane %v85, 4
      %v87 = vadd.f32 %v85, %v86
      %v88 = vrot.slane %v87, 2
      %v89 = vadd.f32 %v87, %v88
      %v90 = vrot.slane %v89, 1
      %v91 = vadd.f32 %v89, %v90
      %s92 = vtos %v91
      %s93 = smul.f32 %s92, 256.0
      %v94 = vmul.f32 %v67, %v72
      %v95 = vsel %vm80, %v94, 0.0
      %96 = vadd.xlane.f32.xlu0 %v95
      %v97 = vpop.xlane.xlu0 %96
      %v98 = vrot.slane %v97, 4
      %v99 = vadd.f32 %v97, %v98
      %v100 = vrot.slane %v99, 2
      %v101 = vadd.f32 %v99, %v100
      %v102 = vrot.slane %v101, 1
      %v103 = vadd.f32 %v101, %v102
      %s104 = vtos %v103
      %s105 = smul.f32 %s104, 256.0
      %v106 = vstv %s93
      %v107 = vrcp.pop %v106
      %s108 = vtos %v107
      %s109 = smul.f32 30.0, %s108
      %v110 = vstv %s105
      %v111 = vrcp.pop %v110
      %s112 = vtos %v111
      %s113 = smul.f32 %s109, %s112
      %s114 = scalar_lea.smem [#allocation5], 0
      %115 = sst [smem:[%s114]] %s113
      %v116 = vpack.c.bf16 %v49, %v48
      %v117 = vld [vmem:[#allocation6] sm:$0xff]
      %v118 = vld [vmem:[#allocation6 + $0x8] sm:$0xff]
      %v119 = vld [vmem:[#allocation6 + $0x10] sm:$0xff]
      %v120 = vld [vmem:[#allocation6 + $0x18] sm:$0xff]
      %v121 = vld [vmem:[#allocation6 + $0x20] sm:$0xff]
      %v122 = vld [vmem:[#allocation6 + $0x28] sm:$0xff]
      %v123 = vld [vmem:[#allocation6 + $0x30] sm:$0xff]
      %v124 = vld [vmem:[#allocation6 + $0x38] sm:$0xff]
      %v125 = vld [vmem:[#allocation6 + $0x40] sm:$0xff]
      %v126 = vld [vmem:[#allocation6 + $0x48] sm:$0xff]
      %v127 = vld [vmem:[#allocation6 + $0x50] sm:$0xff]
      %v128 = vld [vmem:[#allocation6 + $0x58] sm:$0xff]
      %v129 = vld [vmem:[#allocation6 + $0x60] sm:$0xff]
      %v130 = vld [vmem:[#allocation6 + $0x68] sm:$0xff]
      %v131 = vld [vmem:[#allocation6 + $0x70] sm:$0xff]
      %v132 = vld [vmem:[#allocation6 + $0x78] sm:$0xff]
      %v149 = vunpack.c.l.b16 %v117
      %v150 = vunpack.c.h.b16 %v117
      %v151 = vunpack.c.l.b16 %v118
      %v152 = vunpack.c.h.b16 %v118
      %v153 = vunpack.c.l.b16 %v119
      %v154 = vunpack.c.h.b16 %v119
      %v155 = vunpack.c.l.b16 %v120
      %v156 = vunpack.c.h.b16 %v120
      %v157 = vunpack.c.l.b16 %v121
      %v158 = vunpack.c.h.b16 %v121
      %v159 = vunpack.c.l.b16 %v122
      %v160 = vunpack.c.h.b16 %v122
      %v161 = vunpack.c.l.b16 %v123
      %v162 = vunpack.c.h.b16 %v123
      %v163 = vunpack.c.l.b16 %v124
      %v164 = vunpack.c.h.b16 %v124
      %v165 = vunpack.c.l.b16 %v125
      %v166 = vunpack.c.h.b16 %v125
      %v167 = vunpack.c.l.b16 %v126
      %v168 = vunpack.c.h.b16 %v126
      %v169 = vunpack.c.l.b16 %v127
      %v170 = vunpack.c.h.b16 %v127
      %v171 = vunpack.c.l.b16 %v128
      %v172 = vunpack.c.h.b16 %v128
      %v173 = vunpack.c.l.b16 %v129
      %v174 = vunpack.c.h.b16 %v129
      %v175 = vunpack.c.l.b16 %v130
      %v176 = vunpack.c.h.b16 %v130
      %v177 = vunpack.c.l.b16 %v131
      %v178 = vunpack.c.h.b16 %v131
      %v179 = vunpack.c.l.b16 %v132
      %v180 = vunpack.c.h.b16 %v132
      %v181 = vpack.c.b16 %v151, %v149
      %v182 = vpack.c.b16 %v152, %v150
      %v183 = vpack.c.b16 %v155, %v153
      %v184 = vpack.c.b16 %v156, %v154
      %v185 = vpack.c.b16 %v159, %v157
      %v186 = vpack.c.b16 %v160, %v158
      %v187 = vpack.c.b16 %v163, %v161
      %v188 = vpack.c.b16 %v164, %v162
      %v189 = vpack.c.b16 %v167, %v165
      %v190 = vpack.c.b16 %v168, %v166
      %v191 = vpack.c.b16 %v171, %v169
      %v192 = vpack.c.b16 %v172, %v170
      %v193 = vpack.c.b16 %v175, %v173
      %v194 = vpack.c.b16 %v176, %v174
      %v195 = vpack.c.b16 %v179, %v177
      %v196 = vpack.c.b16 %v180, %v178
      %213 = vmatprep.subr.bf16.mxu0 %v182
      %214 = vmatpush1.bf16.msra.mxu0 %v181
      %215 = vmatprep.subr.bf16.mxu0 %v184
      %216 = vmatpush1.bf16.msra.mxu0 %v183
      %217 = vmatprep.subr.bf16.mxu0 %v186
      %218 = vmatpush1.bf16.msra.mxu0 %v185
      %219 = vmatprep.subr.bf16.mxu0 %v188
      %220 = vmatpush1.bf16.msra.mxu0 %v187
      %221 = vmatprep.subr.bf16.mxu0 %v190
      %222 = vmatpush1.bf16.msra.mxu0 %v189
      %223 = vmatprep.subr.bf16.mxu0 %v192
      %224 = vmatpush1.bf16.msra.mxu0 %v191
      %225 = vmatprep.subr.bf16.mxu0 %v194
      %226 = vmatpush1.bf16.msra.mxu0 %v193
      %227 = vmatprep.subr.bf16.mxu0 %v196
      %228 = vmatpush1.bf16.msra.mxu0 %v195
      %229 = vmatprep.subr.bf16.mxu0 0
      %230 = vmatpush1.bf16.msra.mxu0 0
      %231 = vmatprep.subr.bf16.mxu0 0
      %232 = vmatpush1.bf16.msra.mxu0 0
      %233 = vmatprep.subr.bf16.mxu0 0
      %234 = vmatpush1.bf16.msra.mxu0 0
      %235 = vmatprep.subr.bf16.mxu0 0
      %236 = vmatpush1.bf16.msra.mxu0 0
      %237 = vmatprep.subr.bf16.mxu0 0
      %238 = vmatpush1.bf16.msra.mxu0 0
      %239 = vmatprep.subr.bf16.mxu0 0
      %240 = vmatpush1.bf16.msra.mxu0 0
      %241 = vmatprep.subr.bf16.mxu0 0
      %242 = vmatpush1.bf16.msra.mxu0 0
      %243 = vmatprep.subr.bf16.mxu0 0
      %244 = vmatpush1.bf16.msra.mxu0 0
      %245 = vmatprep.mubr.bf16.mxu0 0
      %246 = vmatmul.mubr.bf16.gmra.mrb[0].mxu0 %v116
      %v247 = vpop.f32.mrb[0].mxu0
      %v248 = vadd.f32 0.0, %v247
      %v249 = vpop.f32.mrb[0].mxu0
      %v250 = vadd.f32 0.0, %v249
      %v251 = vpop.f32.mrb[0].mxu0
      %v252 = vadd.f32 0.0, %v251
      %v253 = vpop.f32.mrb[0].mxu0
      %v254 = vadd.f32 0.0, %v253
      %255 = vdwg.mxu0
      %v256 = vmul.f32 %v248, %v252
      %v257 = vmul.f32 %v250, %v254
      %v258 = vadd.f32 %v256, %v257
      %v259 = vpack.c.bf16 %v258, %v258
      %260 = vst [vmem:[#allocation2] sm:$0xf] %v259
      %v261 = vmul.f32 %v250, %v252
      %v262 = vmul.f32 %v248, %v254
      %v263 = vsub.f32 %v261, %v262
      %v264 = vpack.c.bf16 %v263, %v263
      %265 = vst [vmem:[#allocation2 + $0x4] sm:$0xf] %v264
      %266 = vst.msk [vmem:[#allocation3] sm:$0xff] %vm80, -inf
    $region25: #{run.1} parent=1 // pred_fallthru
      _
    %v267 = vld [vmem:[#allocation2] sm:$0xff]
    %v268 = vld [vmem:[#allocation9] sm:$0xff]
    %v269 = vld [vmem:[#allocation9 + $0x8] sm:$0xff]
    %v270 = vld [vmem:[#allocation9 + $0x10] sm:$0xff]
    %v271 = vld [vmem:[#allocation9 + $0x18] sm:$0xff]
    %v272 = vld [vmem:[#allocation9 + $0x20] sm:$0xff]
    %v273 = vld [vmem:[#allocation9 + $0x28] sm:$0xff]
    %v274 = vld [vmem:[#allocation9 + $0x30] sm:$0xff]
    %v275 = vld [vmem:[#allocation9 + $0x38] sm:$0xff]
    %v276 = vld [vmem:[#allocation9 + $0x40] sm:$0xff]
    %v277 = vld [vmem:[#allocation9 + $0x48] sm:$0xff]
    %v278 = vld [vmem:[#allocation9 + $0x50] sm:$0xff]
    %v279 = vld [vmem:[#allocation9 + $0x58] sm:$0xff]
    %v280 = vld [vmem:[#allocation9 + $0x60] sm:$0xff]
    %v281 = vld [vmem:[#allocation9 + $0x68] sm:$0xff]
    %v282 = vld [vmem:[#allocation9 + $0x70] sm:$0xff]
    %v283 = vld [vmem:[#allocation9 + $0x78] sm:$0xff]
    %v284 = vld [vmem:[#allocation9 + $0x80] sm:$0xff]
    %v285 = vld [vmem:[#allocation9 + $0x88] sm:$0xff]
    %v286 = vld [vmem:[#allocation9 + $0x90] sm:$0xff]
    %v287 = vld [vmem:[#allocation9 + $0x98] sm:$0xff]
    %v288 = vld [vmem:[#allocation9 + $0xa0] sm:$0xff]
    %v289 = vld [vmem:[#allocation9 + $0xa8] sm:$0xff]
    %v290 = vld [vmem:[#allocation9 + $0xb0] sm:$0xff]
    %v291 = vld [vmem:[#allocation9 + $0xb8] sm:$0xff]
    %v292 = vld [vmem:[#allocation9 + $0xc0] sm:$0xff]
    %v293 = vld [vmem:[#allocation9 + $0xc8] sm:$0xff]
    %v294 = vld [vmem:[#allocation9 + $0xd0] sm:$0xff]
    %v295 = vld [vmem:[#allocation9 + $0xd8] sm:$0xff]
    %v296 = vld [vmem:[#allocation9 + $0xe0] sm:$0xff]
    %v297 = vld [vmem:[#allocation9 + $0xe8] sm:$0xff]
    %v298 = vld [vmem:[#allocation9 + $0xf0] sm:$0xff]
    %v299 = vld [vmem:[#allocation9 + $0xf8] sm:$0xff]
    %v301 = vunpack.c.l.b16 %v267
    %v302 = vunpack.c.h.b16 %v267
    %v303 = vpack.c.b16 %v301, %v301
    %v304 = vpack.c.b16 %v302, %v302
    %v339 = vunpack.c.l.b16 %v268
    %v340 = vunpack.c.h.b16 %v268
    %v341 = vunpack.c.l.b16 %v269
    %v342 = vunpack.c.h.b16 %v269
    %v343 = vunpack.c.l.b16 %v270
    %v344 = vunpack.c.h.b16 %v270
    %v345 = vunpack.c.l.b16 %v271
    %v346 = vunpack.c.h.b16 %v271
    %v347 = vunpack.c.l.b16 %v272
    %v348 = vunpack.c.h.b16 %v272
    %v349 = vunpack.c.l.b16 %v273
    %v350 = vunpack.c.h.b16 %v273
    %v351 = vunpack.c.l.b16 %v274
    %v352 = vunpack.c.h.b16 %v274
    %v353 = vunpack.c.l.b16 %v275
    %v354 = vunpack.c.h.b16 %v275
    %v355 = vunpack.c.l.b16 %v276
    %v356 = vunpack.c.h.b16 %v276
    %v357 = vunpack.c.l.b16 %v277
    %v358 = vunpack.c.h.b16 %v277
    %v359 = vunpack.c.l.b16 %v278
    %v360 = vunpack.c.h.b16 %v278
    %v361 = vunpack.c.l.b16 %v279
    %v362 = vunpack.c.h.b16 %v279
    %v363 = vunpack.c.l.b16 %v280
    %v364 = vunpack.c.h.b16 %v280
    %v365 = vunpack.c.l.b16 %v281
    %v366 = vunpack.c.h.b16 %v281
    %v367 = vunpack.c.l.b16 %v282
    %v368 = vunpack.c.h.b16 %v282
    %v369 = vunpack.c.l.b16 %v283
    %v370 = vunpack.c.h.b16 %v283
    %v371 = vunpack.c.l.b16 %v284
    %v372 = vunpack.c.h.b16 %v284
    %v373 = vunpack.c.l.b16 %v285
    %v374 = vunpack.c.h.b16 %v285
    %v375 = vunpack.c.l.b16 %v286
    %v376 = vunpack.c.h.b16 %v286
    %v377 = vunpack.c.l.b16 %v287
    %v378 = vunpack.c.h.b16 %v287
    %v379 = vunpack.c.l.b16 %v288
    %v380 = vunpack.c.h.b16 %v288
    %v381 = vunpack.c.l.b16 %v289
    %v382 = vunpack.c.h.b16 %v289
    %v383 = vunpack.c.l.b16 %v290
    %v384 = vunpack.c.h.b16 %v290
    %v385 = vunpack.c.l.b16 %v291
    %v386 = vunpack.c.h.b16 %v291
    %v387 = vunpack.c.l.b16 %v292
    %v388 = vunpack.c.h.b16 %v292
    %v389 = vunpack.c.l.b16 %v293
    %v390 = vunpack.c.h.b16 %v293
    %v391 = vunpack.c.l.b16 %v294
    %v392 = vunpack.c.h.b16 %v294
    %v393 = vunpack.c.l.b16 %v295
    %v394 = vunpack.c.h.b16 %v295
    %v395 = vunpack.c.l.b16 %v296
    %v396 = vunpack.c.h.b16 %v296
    %v397 = vunpack.c.l.b16 %v297
    %v398 = vunpack.c.h.b16 %v297
    %v399 = vunpack.c.l.b16 %v298
    %v400 = vunpack.c.h.b16 %v298
    %v401 = vunpack.c.l.b16 %v299
    %v402 = vunpack.c.h.b16 %v299
    %v403 = vpack.c.b16 %v341, %v339
    %v404 = vpack.c.b16 %v342, %v340
    %v405 = vpack.c.b16 %v345, %v343
    %v406 = vpack.c.b16 %v346, %v344
    %v407 = vpack.c.b16 %v349, %v347
    %v408 = vpack.c.b16 %v350, %v348
    %v409 = vpack.c.b16 %v353, %v351
    %v410 = vpack.c.b16 %v354, %v352
    %v411 = vpack.c.b16 %v357, %v355
    %v412 = vpack.c.b16 %v358, %v356
    %v413 = vpack.c.b16 %v361, %v359
    %v414 = vpack.c.b16 %v362, %v360
    %v415 = vpack.c.b16 %v365, %v363
    %v416 = vpack.c.b16 %v366, %v364
    %v417 = vpack.c.b16 %v369, %v367
    %v418 = vpack.c.b16 %v370, %v368
    %v419 = vpack.c.b16 %v373, %v371
    %v420 = vpack.c.b16 %v374, %v372
    %v421 = vpack.c.b16 %v377, %v375
    %v422 = vpack.c.b16 %v378, %v376
    %v423 = vpack.c.b16 %v381, %v379
    %v424 = vpack.c.b16 %v382, %v380
    %v425 = vpack.c.b16 %v385, %v383
    %v426 = vpack.c.b16 %v386, %v384
    %v427 = vpack.c.b16 %v389, %v387
    %v428 = vpack.c.b16 %v390, %v388
    %v429 = vpack.c.b16 %v393, %v391
    %v430 = vpack.c.b16 %v394, %v392
    %v431 = vpack.c.b16 %v397, %v395
    %v432 = vpack.c.b16 %v398, %v396
    %v433 = vpack.c.b16 %v401, %v399
    %v434 = vpack.c.b16 %v402, %v400
    %467 = vmatprep.subr.bf16.mxu0 %v404
    %468 = vmatpush1.bf16.msra.mxu0 %v403
    %469 = vmatprep.subr.bf16.mxu0 %v406
    %470 = vmatpush1.bf16.msra.mxu0 %v405
    %471 = vmatprep.subr.bf16.mxu0 %v408
    %472 = vmatpush1.bf16.msra.mxu0 %v407
    %473 = vmatprep.subr.bf16.mxu0 %v410
    %474 = vmatpush1.bf16.msra.mxu0 %v409
    %475 = vmatprep.subr.bf16.mxu0 %v412
    %476 = vmatpush1.bf16.msra.mxu0 %v411
    %477 = vmatprep.subr.bf16.mxu0 %v414
    %478 = vmatpush1.bf16.msra.mxu0 %v413
    %479 = vmatprep.subr.bf16.mxu0 %v416
    %480 = vmatpush1.bf16.msra.mxu0 %v415
    %481 = vmatprep.subr.bf16.mxu0 %v418
    %482 = vmatpush1.bf16.msra.mxu0 %v417
    %483 = vmatprep.subr.bf16.mxu0 %v420
    %484 = vmatpush1.bf16.msra.mxu0 %v419
    %485 = vmatprep.subr.bf16.mxu0 %v422
    %486 = vmatpush1.bf16.msra.mxu0 %v421
    %487 = vmatprep.subr.bf16.mxu0 %v424
    %488 = vmatpush1.bf16.msra.mxu0 %v423
    %489 = vmatprep.subr.bf16.mxu0 %v426
    %490 = vmatpush1.bf16.msra.mxu0 %v425
    %491 = vmatprep.subr.bf16.mxu0 %v428
    %492 = vmatpush1.bf16.msra.mxu0 %v427
    %493 = vmatprep.subr.bf16.mxu0 %v430
    %494 = vmatpush1.bf16.msra.mxu0 %v429
    %495 = vmatprep.subr.bf16.mxu0 %v432
    %496 = vmatpush1.bf16.msra.mxu0 %v431
    %497 = vmatprep.subr.bf16.mxu0 %v434
    %498 = vmatpush1.bf16.msra.mxu0 %v433
    %499 = vmatprep.mubr.bf16.mxu0 %v304
    %500 = vmatmul.mubr.bf16.gmra.mrb[0].mxu0 %v303
    %v501 = vpop.f32.mrb[0].mxu0
    %v502 = vadd.f32 0.0, %v501
    %v503 = vpop.f32.mrb[0].mxu0
    %v504 = vadd.f32 0.0, %v503
    %v505 = vpop.f32.mrb[0].mxu0
    %v506 = vpop.f32.mrb[0].mxu0
    %507 = vdwg.mxu0
    %v508 = vld [vmem:[#allocation3] sm:$0xff]
    %v509 = vmax.f32 %v502, %v504
    %510 = vmax.xlane.f32.xlu0 %v509
    %v511 = vpop.xlane.xlu0 %510
    %v512 = vmax.f32 %v508, %v511
    %vm513 = vcmask 7168
    %514 = vst.msk [vmem:[#allocation3] sm:$0xff] %vm513, %v512
    // Predicated region
    $region26: #{run.1} parent=1 // pred_check
      %p515 = pneg %p44
    $region27: #{run.1} parent=1 // pred_check_branch
      %517 = sbr.rel (%p515) target = $region29
    $region28: #{run.1} parent=1 // pred_region
      %v518 = vld [vmem:[#allocation3] sm:$0xff]
      %v519 = vld [vmem:[#allocation4] sm:$0xff]
      %v520 = vmul.f32 %v518, %v519
      %s521 = sld [smem:[#allocation5]]
      %s522 = ssub.f32 0.0, %s521
      %v523 = vsel %vm513, %v520, 0.0
      %524 = vadd.xlane.f32.xlu0 %v523
      %v525 = vpop.xlane.xlu0 %524
      %v526 = vrot.slane %v525, 4
      %v527 = vadd.f32 %v525, %v526
      %v528 = vrot.slane %v527, 2
      %v529 = vadd.f32 %v527, %v528
      %v530 = vrot.slane %v529, 1
      %v531 = vadd.f32 %v529, %v530
      %s532 = vtos %v531
      %s533 = smul.f32 %s532, 0.5
      %s534 = smul.f32 %s522, %s533
      %s535 = scalar_lea.smem [#allocation11], 0
      %536 = sst [smem:[%s535]] %s534
    $region29: #{run.1} parent=1 // pred_fallthru
      _
    // Predicated region
    $region30: #{run.1} parent=1 // pred_check
      _
    $region31: #{run.1} parent=1 // pred_check_branch
      %538 = sbr.rel (0) target = $region33
    $region32: #{run.1} parent=1 // pred_region
      %s540 = ssub.s32 16, 16
      %541 = vsyncadd [#allocation8], %s540
      %544 = dma.smem_to_hbm [#allocation11], 16, %s3, [#allocation8]
    $region33: #{run.1} parent=1 // pred_fallthru
      _
    // Predicated region
    $region34: #{run.1} parent=1 // pred_check
      _
    $region35: #{run.1} parent=1 // pred_check_branch
      %546 = sbr.rel (0) target = $region37
    $region36: #{run.1} parent=1 // pred_region
      %547 = dma.done [#allocation8], 16
    $region37: #{run.1} parent=1 // pred_fallthru
      _
    %548 = sfence
    %549 = vsyncpa [#allocation7], 1
    %550 = vsyncpa [#allocation10], 1
    %551 = vsyncpa [#allocation8], 1

</llo_original>
